<compile_context>
chip_gen: v7x
topology: tpu7x:2x2x1
jax: 0.10.0
libtpu: 0.0.40
codegen_flags: <defaults>
</compile_context>

<pallas_src>
import functools

import jax
import jax.numpy as jnp
from jax.experimental import pallas as pl
from jax.experimental.pallas import tpu as pltpu

_LANE = 128


def _budgets():
    """(per-input-buffer tile budget, scoped vmem limit) per TPU generation."""
    try:
        vmem = pltpu.get_tpu_info().vmem_capacity_bytes
    except Exception:
        vmem = 64 * 1024 * 1024
    if vmem >= 96 * 1024 * 1024:       # v5e / v6e: 128 MiB physical VMEM
        return 24 * 1024 * 1024, 80 * 1024 * 1024
    # v7x: 64 MiB physical; keep per-buffer <= ~10 MiB so buffers + output fit.
    return 10 * 1024 * 1024, 32 * 1024 * 1024


def _sublane_multiple(itemsize):
    # 32-bit dtypes pack 8 rows per vreg; bf16 -> 16; int8 -> 32.
    return max(8 * (4 // max(itemsize, 1)), 8)


def _choose_row_tile(c_total, rows, itemsize, budget, n_batch):
    """Rows per (1, C, r_tile, 128) input block (4-D path)."""
    sub = _sublane_multiple(itemsize)
    bytes_per_row = c_total * _LANE * itemsize       # one 128-lane row, all channels
    budget_rows = max(int(budget // bytes_per_row), 1)
    # Target >= 2 grid points overall so both v7x TensorCores get work.
    min_tiles = 1 if n_batch >= 2 else 2
    target_rows = max(pl.cdiv(rows, min_tiles), 1)
    r = min(budget_rows, target_rows, rows)
    if r >= rows:
        return rows                                  # full extent: always legal
    r = (r // sub) * sub                             # (8,128) rule / sublane packing
    if r == 0:
        # TODO(synk): for huge C, split C onto an innermost "arbitrary" grid axis
        # with a VMEM accumulator instead of letting one tile blow the budget.
        r = min(sub, rows)
    return r


def _choose_lane_tile(c_total, hw, itemsize, budget, n_batch):
    """Lane tile (multiple of 128) for the (1, C, t_hw) input block (3-D path)."""
    sub = _sublane_multiple(itemsize)
    c_pad = pl.cdiv(c_total, sub) * sub              # C sits on the sublane axis here
    bytes_per_chunk = c_pad * _LANE * itemsize       # one 128-lane chunk, padded C
    budget_chunks = max(int(budget // bytes_per_chunk), 1)
    total_chunks = pl.cdiv(hw, _LANE)
    min_tiles = 1 if n_batch >= 2 else 2
    target_chunks = max(pl.cdiv(total_chunks, min_tiles), 1)
    return max(min(budget_chunks, target_chunks, total_chunks), 1) * _LANE


def _mean_threshold_rows_kernel(thr_ref, x_ref, o_ref, *, ids, c_eff):
    # 4-D layout (HW % 128 == 0).
    # x_ref: (1, C_total, r_tile, 128); o_ref: (1, r_tile, 128); thr_ref: (1,) f32 SMEM.
    if ids == 0:
        x = x_ref[...]
    else:
        # Channel drop in-kernel; C is a major ref axis here -> cheap static view.
        x = x_ref[:, pl.ds(ids, c_eff), :, :]
    # Channel reduce = vreg-wise VPU adds; accumulate in f32 (safe for bf16/fp16).
    s = jnp.sum(x, axis=1, dtype=jnp.float32)            # (1, r_tile, 128)
    # mean > threshold  <=>  sum > threshold * C_eff  (threshold pre-scaled).
    o_ref[...] = (s > thr_ref[0]).astype(o_ref.dtype)


def _mean_threshold_flat_kernel(thr_ref, x_ref, o_ref, *, ids, c_eff):
    # 3-D lane-dense fallback (HW % 128 != 0); partial trailing block handled
    # by Pallas (OOB output lanes discarded).
    # x_ref: (1, C_total, t_hw); o_ref: (1, 1, t_hw); thr_ref: (1,) f32 SMEM.
    if ids == 0:
        x = x_ref[...]
    else:
        x = x_ref[:, pl.ds(ids, c_eff), :]
    s = jnp.sum(x, axis=1, keepdims=True, dtype=jnp.float32)   # (1, 1, t_hw)
    o_ref[...] = (s > thr_ref[0]).astype(o_ref.dtype)


def mean_threshold(x, threshold=0, ids=0):
    """Equivalent to MeanThreshold(threshold, ids)(x) for NCHW input."""
    N, C, H, W = x.shape
    HW = H * W
    c_eff = C - ids
    itemsize = x.dtype.itemsize
    tile_budget, vmem_limit = _budgets()

    # Runtime scalar threshold via SMEM (no recompile per value), pre-scaled by
    # C_eff so the kernel compares the raw channel sum.
    thr = (jnp.asarray(threshold, dtype=jnp.float32) * c_eff).reshape(1)

    cost = pl.CostEstimate(
        flops=N * max(c_eff, 1) * HW,
        transcendentals=0,
        bytes_accessed=N * C * HW * itemsize + N * HW * itemsize,
    )
    cparams = pltpu.CompilerParams(
        dimension_semantics=("parallel", "parallel"),
        vmem_limit_bytes=vmem_limit,
    )
    smem_spec = pl.BlockSpec(memory_space=pltpu.MemorySpace.SMEM)

    # TODO(synk): sweep pipeline_mode=pl.Buffered(3) on the input spec for v7x.
    if HW % _LANE == 0:
        # 4-D layout: channel reduce on VPU, dense sublanes/lanes for in & out.
        R = HW // _LANE
        x4 = x.reshape(N, C, R, _LANE)
        r_tile = _choose_row_tile(C, R, itemsize, tile_budget, N)
        grid = (N, pl.cdiv(R, r_tile))
        kernel = functools.partial(
            _mean_threshold_rows_kernel, ids=ids, c_eff=c_eff)
        out = pl.pallas_call(
            kernel,
            out_shape=jax.ShapeDtypeStruct((N, R, _LANE), x.dtype),
            grid=grid,
            in_specs=[
                smem_spec,
                pl.BlockSpec((1, C, r_tile, _LANE), lambda n, s: (n, 0, s, 0)),
            ],
            out_specs=pl.BlockSpec((1, r_tile, _LANE), lambda n, s: (n, s, 0)),
            compiler_params=cparams,
            cost_estimate=cost,
        )(thr, x4)
        return out.reshape(N, 1, H, W)

    # 3-D lane-dense fallback: no jnp.pad and no post-slice — Pallas handles
    # the partial trailing block (OOB input lanes unspecified, OOB output
    # lanes discarded).
    x3 = x.reshape(N, C, HW)
    t_hw = _choose_lane_tile(C, HW, itemsize, tile_budget, N)
    grid = (N, pl.cdiv(HW, t_hw))
    kernel = functools.partial(_mean_threshold_flat_kernel, ids=ids, c_eff=c_eff)
    out = pl.pallas_call(
        kernel,
        out_shape=jax.ShapeDtypeStruct((N, 1, HW), x.dtype),
        grid=grid,
        in_specs=[
            smem_spec,
            pl.BlockSpec((1, C, t_hw), lambda n, s: (n, 0, s)),
        ],
        out_specs=pl.BlockSpec((1, 1, t_hw), lambda n, s: (n, 0, s)),
        compiler_params=cparams,
        cost_estimate=cost,
    )(thr, x3)
    return out.reshape(N, 1, H, W)


def _reference(x, threshold=0, ids=0):
    x = x[:, ids:, :, :]
    m = jnp.mean(x, axis=1, keepdims=True)
    return (m > threshold).astype(x.dtype)


if __name__ == "__main__":
    key = jax.random.PRNGKey(0)
    x = jax.random.normal(key, (2, 4, 16, 16), dtype=jnp.float32)

    # Primary check: HW % 128 == 0 (4-D path), threshold=0, ids=0.
    out = mean_threshold(x, threshold=0, ids=0)
    jax.block_until_ready(out)
    ref = _reference(x, threshold=0, ids=0)
    assert out.shape == (2, 1, 16, 16), out.shape
    assert out.dtype == x.dtype, out.dtype
    assert jnp.array_equal(out, ref), "mismatch vs reference (4-D path)"

    # Channel drop (ids>0) + nonzero threshold on the 4-D path.
    out2 = mean_threshold(x, threshold=0.25, ids=1)
    jax.block_until_ready(out2)
    assert jnp.array_equal(out2, _reference(x, threshold=0.25, ids=1)), \
        "mismatch vs reference (ids>0)"

    # 3-D fallback path: HW not a multiple of 128 (partial trailing block).
    x3 = jax.random.normal(jax.random.PRNGKey(1), (2, 3, 6, 10),
                           dtype=jnp.float32)
    out3 = mean_threshold(x3, threshold=0, ids=0)
    jax.block_until_ready(out3)
    assert jnp.array_equal(out3, _reference(x3, threshold=0, ids=0)), \
        "mismatch vs reference (3-D path)"

    print("KERNEL_OK")
</pallas_src>

<mosaic_0001>
module attributes {stable_mosaic.version = 11 : i64} {
  func.func @_mean_threshold_rows_kernel(%arg0: i32, %arg1: i32, %arg2: memref<1xf32, #tpu.memory_space<smem>>, %arg3: memref<1x4x2x128xf32, #tpu.memory_space<vmem>>, %arg4: memref<1x2x128xf32, #tpu.memory_space<vmem>>) attributes {dimension_semantics = [#tpu.dimension_semantics<parallel>, #tpu.dimension_semantics<parallel>], iteration_bounds = array<i64: 2, 1>, scalar_prefetch = 0 : i64, scratch_operands = 0 : i64, tpu.core_type = #tpu.core_type<tc>, window_params = [{transform_indices = @transform_0, window_bounds = array<i64: 1>}, {transform_indices = @transform_1, window_bounds = array<i64: 1, 4, 2, 128>}, {transform_indices = @transform_2, window_bounds = array<i64: 1, 2, 128>}]} {
    %c0 = arith.constant 0 : index
    %c0_0 = arith.constant 0 : index
    %c0_1 = arith.constant 0 : index
    %c0_2 = arith.constant 0 : index
    %0 = vector.load %arg3[%c0, %c0_0, %c0_1, %c0_2] : memref<1x4x2x128xf32, #tpu.memory_space<vmem>>, vector<1x4x2x128xf32>
    %cst = arith.constant dense<0.000000e+00> : vector<1x2x128xf32>
    %1 = vector.multi_reduction <add>, %0, %cst [1] : vector<1x4x2x128xf32> to vector<1x2x128xf32>
    %c0_3 = arith.constant 0 : index
    %2 = memref.load %arg2[%c0_3] : memref<1xf32, #tpu.memory_space<smem>>
    %3 = vector.broadcast %2 : f32 to vector<1x2x128xf32>
    %4 = arith.cmpf ogt, %1, %3 : vector<1x2x128xf32>
    %5 = arith.extui %4 : vector<1x2x128xi1> to vector<1x2x128xi32>
    %6 = arith.sitofp %5 : vector<1x2x128xi32> to vector<1x2x128xf32>
    %c0_4 = arith.constant 0 : index
    %c0_5 = arith.constant 0 : index
    %c0_6 = arith.constant 0 : index
    %7 = vector.load %arg4[%c0_4, %c0_5, %c0_6] : memref<1x2x128xf32, #tpu.memory_space<vmem>>, vector<1x2x128xf32>
    tpu.vector_store %arg4[%c0_4, %c0_5, %c0_6], %6 {strides = array<i32>} : memref<1x2x128xf32, #tpu.memory_space<vmem>>, vector<1x2x128xf32>,
    return
  }
  func.func @transform_0(%arg0: i32, %arg1: i32) -> i32 {
    %c0_i32 = arith.constant 0 : i32
    %c0_i32_0 = arith.constant 0 : i32
    return %c0_i32 : i32
  }
  func.func @transform_1(%arg0: i32, %arg1: i32) -> (i32, i32, i32, i32) {
    %c0_i32 = arith.constant 0 : i32
    %c0_i32_0 = arith.constant 0 : i32
    %c0_i32_1 = arith.constant 0 : i32
    return %arg0, %c0_i32, %arg1, %c0_i32_0 : i32, i32, i32, i32
  }
  func.func @transform_2(%arg0: i32, %arg1: i32) -> (i32, i32, i32) {
    %c0_i32 = arith.constant 0 : i32
    %c0_i32_0 = arith.constant 0 : i32
    return %arg0, %arg1, %c0_i32 : i32, i32, i32
  }
}

</mosaic_0001>

<llo_original>
// kernel: tpu_custom_call.1
$region0: #{tpu_custom_call.1}
  #allocation0 [shape = 'u32[]', space=smem, size = 0x4, offset = 0x4, fixed_abs, tag = 'smem constant byte address 0x4 - core index']
  #allocation1 [shape = 'u32[144,128]{1,0:T(1,128)}', space=vmem, size = 0x12000, scoped, tag = 'internal scratch']
  #allocation2 [shape = 'f32[1]{0:T(128)S(6)}', space=smem, size = 0x200, scoped, tag = 'scoped memory for tpu_custom_call.1']
  %s0 = inlined_call_operand.<no memory space> [shape: f32[1], index: 0, kind: input, shape index: {}]
  %s1 = inlined_call_operand.hbm [shape: f32[2,4,2,128], index: 1, kind: input, shape index: {}]
  %s2 = inlined_call_operand.hbm [shape: f32[2,2,128], index: 2, kind: output, shape index: {}]
  %s3 = sld [smem:[#allocation0]]
  $region45: #{tpu_custom_call.1} parent=0
    _
  %s5 = ssub.s32 1, %s3
  %s6 = scalar_select 0, %s5, %s3
  %7 = sst [smem:[#allocation2]] %s0
  $region1: #{tpu_custom_call.1} parent=0
    #allocation3 [shape = 'u8[8192]{0}', space=vmem, size = 0x2000, scoped, tag = 'input window, operand 1']
    #allocation4 [shape = 's32[2]{0}', space=sflag, size = 0x8, scoped, tag = 'scoped memory for tpu_custom_call.1']
    #allocation5 [shape = 's32[2]{0}', space=sflag, size = 0x8, scoped, tag = 'scoped memory for tpu_custom_call.1']
    #allocation6 [shape = 'u8[2048]{0}', space=vmem, size = 0x800, scoped, tag = 'output window, operand 0']
    %8 = vsyncpa [#allocation4], 0
    %s9 = scalar_lea.sflag [#allocation4], 1
    %10 = vsyncpa %s9, 0
    %11 = vsyncpa [#allocation5], 0
    %s12 = scalar_lea.sflag [#allocation5], 1
    %13 = vsyncpa %s12, 0
    loop: start=0, step=1, limit=4
    $region2: #{tpu_custom_call.1} parent=1 // loop_pre_header
      _
    $region3: #{tpu_custom_call.1} parent=1 // loop_header
      %s15 = sphi 0, %s19
      %p16 = scmp.ge.s32.totalorder %s15, 4
      %s22 = sphi 0, %s34
      %s23 = sphi 0, %s30
      %s24 = sphi 0, %s22
      %s25 = sphi 0, %s23
      %s26 = sphi 0, %s24
      %s27 = sphi 0, %s25
      %s35 = sphi 0, %s35
      %s37 = sphi 0, %s35
      %s38 = sphi 0, %s37
      %s52 = sphi 0, %s38
      %s60 = sphi 0, %s62
      %s63 = sphi 0, %s60
      %s64 = sphi 0, %s63
      %s80 = sphi 0, %s64
      %s88 = sphi 0, %s90
      %s91 = sphi 0, %s88
      %s92 = sphi 0, %s91
      %s108 = sphi 0, %s92
    $region4: #{tpu_custom_call.1} parent=1 // loop_header_branch
      %18 = sbr.rel (%p16) target = $region8
    $region5: #{tpu_custom_call.1} parent=1 // loop_body
      %s20 = ssub.s32 %s15, 1
      %s21 = ssub.s32 %s15, 2
      %s28 = sadd.s32 1, %s23
      %p29 = scmp.ge.s32.totalorder %s28, 1
      %s30 = scalar_select %p29, 0, %s28
      %s31 = sadd.s32 1, %s22
      %s32 = scalar_select %p29, %s31, %s22
      %p33 = scmp.ge.s32.totalorder %s32, 2
      %s34 = scalar_select %p33, 0, %s32
      %s36 = sadd.s32 %s35, 1
      %p39 = scmp.eq.s32.totalorder %s15, 1
      %p40 = scmp.ne.s32.totalorder %s35, %s37
      %p41 = scmp.eq.s32.totalorder %s15, 0
      %p42 = por %p40, %p41
      %p43 = scmp.ne.s32.totalorder %s35, %s37
      %p44 = scmp.eq.s32.totalorder %s20, 1
      %p45 = por %p43, %p44
      %p46 = scmp.ne.s32.totalorder %s37, %s38
      %p47 = scmp.eq.s32.totalorder %s20, 0
      %p48 = por %p46, %p47
      %p49 = scmp.ne.s32.totalorder %s37, %s38
      %p50 = scmp.eq.s32.totalorder %s21, 1
      %p51 = por %p49, %p50
      %p53 = scmp.ne.s32.totalorder %s38, %s52
      %p54 = scmp.eq.s32.totalorder %s21, 0
      %p55 = por %p53, %p54
      %s56 = ssub.s32 %s22, %s34
      %s57 = ssub.s32 %s23, %s30
      %s58 = sor.u32 %s56, %s57
      %p59 = scmp.eq.s32.totalorder %s58, 0
      %s61 = sadd.s32 %s60, 1
      %s62 = scalar_select %p59, %s60, %s61
      %p65 = pneg %p59
      %p66 = scmp.eq.s32.totalorder %s15, 1
      %p67 = por %p65, %p66
      %p68 = scmp.ne.s32.totalorder %s60, %s63
      %p69 = scmp.eq.s32.totalorder %s15, 0
      %p70 = por %p68, %p69
      %p71 = scmp.ne.s32.totalorder %s60, %s63
      %p72 = scmp.eq.s32.totalorder %s20, 1
      %p73 = por %p71, %p72
      %p74 = scmp.ne.s32.totalorder %s63, %s64
      %p75 = scmp.eq.s32.totalorder %s20, 0
      %p76 = por %p74, %p75
      %p77 = scmp.ne.s32.totalorder %s63, %s64
      %p78 = scmp.eq.s32.totalorder %s21, 1
      %p79 = por %p77, %p78
      %p81 = scmp.ne.s32.totalorder %s64, %s80
      %p82 = scmp.eq.s32.totalorder %s21, 0
      %p83 = por %p81, %p82
      %s84 = ssub.s32 %s22, %s34
      %s85 = ssub.s32 %s23, %s30
      %s86 = sor.u32 %s84, %s85
      %p87 = scmp.eq.s32.totalorder %s86, 0
      %s89 = sadd.s32 %s88, 1
      %s90 = scalar_select %p87, %s88, %s89
      %p93 = pneg %p87
      %p94 = scmp.eq.s32.totalorder %s15, 1
      %p95 = por %p93, %p94
      %p96 = scmp.ne.s32.totalorder %s88, %s91
      %p97 = scmp.eq.s32.totalorder %s15, 0
      %p98 = por %p96, %p97
      %p99 = scmp.ne.s32.totalorder %s88, %s91
      %p100 = scmp.eq.s32.totalorder %s20, 1
      %p101 = por %p99, %p100
      %p102 = scmp.ne.s32.totalorder %s91, %s92
      %p103 = scmp.eq.s32.totalorder %s20, 0
      %p104 = por %p102, %p103
      %p105 = scmp.ne.s32.totalorder %s91, %s92
      %p106 = scmp.eq.s32.totalorder %s21, 1
      %p107 = por %p105, %p106
      %p109 = scmp.ne.s32.totalorder %s92, %s108
      %p110 = scmp.eq.s32.totalorder %s21, 0
      %p111 = por %p109, %p110
      %p112 = scmp.le.s32.totalorder 1, %s15
      %p113 = scmp.lt.s32.totalorder %s15, 3
      %p114 = pnand %p112, %p113
      %p115 = pneg %p114
      // Predicated region
      $region9: #{tpu_custom_call.1} parent=5 // pred_check
        _
      $region10: #{tpu_custom_call.1} parent=5 // pred_check_branch
        %117 = sbr.rel (%p114) target = $region12
      $region11: #{tpu_custom_call.1} parent=5 // pred_region
        %s118 = ssub.s32 %s15, 1
        // Predicated region
        $region13: #{tpu_custom_call.1} parent=11 // pred_check
          %p119 = pneg %p48
        $region14: #{tpu_custom_call.1} parent=11 // pred_check_branch
          %121 = sbr.rel (%p119) target = $region16
        $region15: #{tpu_custom_call.1} parent=11 // pred_region
          _
        $region16: #{tpu_custom_call.1} parent=11 // pred_fallthru
          _
      $region12: #{tpu_custom_call.1} parent=5 // pred_fallthru
        _
      %p122 = scmp.lt.s32.totalorder %s15, 2
      // Predicated region
      $region17: #{tpu_custom_call.1} parent=5 // pred_check
        %p123 = pneg %p122
      $region18: #{tpu_custom_call.1} parent=5 // pred_check_branch
        %125 = sbr.rel (%p123) target = $region20
      $region19: #{tpu_custom_call.1} parent=5 // pred_region
        // Predicated region
        $region21: #{tpu_custom_call.1} parent=19 // pred_check
          %p126 = pneg %p70
        $region22: #{tpu_custom_call.1} parent=19 // pred_check_branch
          %128 = sbr.rel (%p126) target = $region24
        $region23: #{tpu_custom_call.1} parent=19 // pred_region
          %s129 = sand.u32 %s60, 1
          %s130 = scalar_lea.sflag [#allocation4], %s129
          %s131 = sand.u32 %s60, 1
          %s132 = smul.addr %s131, 8
          %s133 = scalar_lea.vmem [#allocation3], %s132
          %s135 = ssub.s32 128, 128
          %136 = vsyncadd %s130, %s135
          %s137 = smul.addr %s22, 4
          %s138 = sadd.s32 %s23, %s137
          %s139 = smul.addr %s138, 32
          %s140 = scalar_lea.hbm %s1, %s139
          %s141 = sshll.u32 %s133, 4
          %s142 = int_to_ptr.vmem [resolvable:$true] %s141
          %147 = dma.hbm_to_vmem [thread:$0]  %s140, 128, %s142, %s130, 32, 32, 2
        $region24: #{tpu_custom_call.1} parent=19 // pred_fallthru
          _
      $region20: #{tpu_custom_call.1} parent=5 // pred_fallthru
        _
      %p148 = scmp.le.s32.totalorder 1, %s15
      %p149 = scmp.lt.s32.totalorder %s15, 3
      %p150 = pnand %p148, %p149
      %p151 = pneg %p150
      // Predicated region
      $region25: #{tpu_custom_call.1} parent=5 // pred_check
        _
      $region26: #{tpu_custom_call.1} parent=5 // pred_check_branch
        %153 = sbr.rel (%p150) target = $region28
      $region27: #{tpu_custom_call.1} parent=5 // pred_region
        %s154 = ssub.s32 %s15, 1
        %s155 = sand.u32 %s63, 1
        %s156 = scalar_lea.sflag [#allocation4], %s155
        %s157 = sand.u32 %s63, 1
        %s158 = smul.addr %s157, 8
        %s159 = scalar_lea.vmem [#allocation3], %s158
        // Predicated region
        $region29: #{tpu_custom_call.1} parent=27 // pred_check
          %p160 = pneg %p76
        $region30: #{tpu_custom_call.1} parent=27 // pred_check_branch
          %162 = sbr.rel (%p160) target = $region32
        $region31: #{tpu_custom_call.1} parent=27 // pred_region
          %163 = dma.done %s156, 128
        $region32: #{tpu_custom_call.1} parent=27 // pred_fallthru
          _
        %p164 = pneg %p48
        %p165 = pneg %p45
        %s166 = sand.u32 %s63, 1
        %s167 = scalar_lea.sflag [#allocation4], %s166
        %s168 = sand.u32 %s63, 1
        %s169 = smul.addr %s168, 8
        %s170 = scalar_lea.vmem [#allocation3], %s169
        %p171 = pneg %p76
        %p172 = pneg %p73
        %p173 = pneg %p104
        %p174 = pneg %p101
        %s175 = sand.u32 %s91, 1
        %s176 = scalar_lea.sflag [#allocation5], %s175
        %s177 = sand.u32 %s91, 1
        %s178 = smul.addr %s177, 2
        %s179 = scalar_lea.vmem [#allocation6], %s178
        %v180 = vld [vmem:[%s159] sm:$0x3]
        %v181 = vld [vmem:[%s159 + $0x2] sm:$0x3]
        %v182 = vld [vmem:[%s159 + $0x4] sm:$0x3]
        %v183 = vld [vmem:[%s159 + $0x6] sm:$0x3]
        %vm184 = vcmask 1041408
        %v185 = vsel %vm184, %v180, 0.0
        %v186 = vsel %vm184, %v181, 0.0
        %v187 = vadd.f32 %v185, %v186
        %v188 = vsel %vm184, %v182, 0.0
        %v189 = vadd.f32 %v187, %v188
        %v190 = vsel %vm184, %v183, 0.0
        %v191 = vadd.f32 %v189, %v190
        %s192 = sld [smem:[#allocation2]]
        %v193 = vstv %s192
        %vm194 = vcmp.gt.f32.partialorder %v191, %v193
        %v195 = vsel %vm194, 1, 0
        %v196 = vcvt.s32.f32 %v195
        %197 = vst [vmem:[%s179] sm:$0x3] %v196
        %s198 = sand.u32 %s91, 1
        %s199 = scalar_lea.sflag [#allocation5], %s198
        %s200 = sand.u32 %s91, 1
        %s201 = smul.addr %s200, 2
        %s202 = scalar_lea.vmem [#allocation6], %s201
        // Predicated region
        $region33: #{tpu_custom_call.1} parent=27 // pred_check
          %p203 = pneg %p101
        $region34: #{tpu_custom_call.1} parent=27 // pred_check_branch
          %205 = sbr.rel (%p203) target = $region36
        $region35: #{tpu_custom_call.1} parent=27 // pred_region
          %s207 = ssub.s32 32, 32
          %208 = vsyncadd %s199, %s207
          %s209 = sadd.s32 %s25, %s24
          %s210 = smul.addr %s209, 32
          %s211 = scalar_lea.hbm %s2, %s210
          %s213 = sshll.u32 %s202, 4
          %s214 = int_to_ptr.vmem [resolvable:$true] %s213
          %216 = dma.vmem_to_hbm [thread:$0]  %s214, 32, %s211, %s199
        $region36: #{tpu_custom_call.1} parent=27 // pred_fallthru
          _
      $region28: #{tpu_custom_call.1} parent=5 // pred_fallthru
        _
      %p217 = scmp.le.s32.totalorder 2, %s15
      // Predicated region
      $region37: #{tpu_custom_call.1} parent=5 // pred_check
        %p218 = pneg %p217
      $region38: #{tpu_custom_call.1} parent=5 // pred_check_branch
        %220 = sbr.rel (%p218) target = $region40
      $region39: #{tpu_custom_call.1} parent=5 // pred_region
        %s221 = ssub.s32 %s15, 2
        // Predicated region
        $region41: #{tpu_custom_call.1} parent=39 // pred_check
          %p222 = pneg %p107
        $region42: #{tpu_custom_call.1} parent=39 // pred_check_branch
          %224 = sbr.rel (%p222) target = $region44
        $region43: #{tpu_custom_call.1} parent=39 // pred_region
          %s225 = sand.u32 %s92, 1
          %s226 = scalar_lea.sflag [#allocation5], %s225
          %s227 = sand.u32 %s92, 1
          %s228 = smul.addr %s227, 2
          %s229 = scalar_lea.vmem [#allocation6], %s228
          %230 = dma.done %s226, 32
        $region44: #{tpu_custom_call.1} parent=39 // pred_fallthru
          _
      $region40: #{tpu_custom_call.1} parent=5 // pred_fallthru
        _
    $region6: #{tpu_custom_call.1} parent=1 // loop_footer
      %s19 = sadd.s32 1, %s15
    $region7: #{tpu_custom_call.1} parent=1 // loop_footer_branch
      %14 = sbr.rel target = $region3
    $region8: #{tpu_custom_call.1} parent=1 // loop_exit
      _
    %231 = vsyncpa [#allocation4], 1
    %s232 = scalar_lea.sflag [#allocation4], 1
    %233 = vsyncpa %s232, 1
    %234 = vsyncpa [#allocation5], 1
    %s235 = scalar_lea.sflag [#allocation5], 1
    %236 = vsyncpa %s235, 1

</llo_original>
